<compile_context>
chip_gen: v7x
topology: tpu7x:2x2x1
jax: 0.10.0
libtpu: 0.0.40
codegen_flags: <defaults>
</compile_context>

<pallas_src>
import functools

import jax
import jax.numpy as jnp
from jax.experimental import pallas as pl
from jax.experimental.pallas import tpu as pltpu


def _cdiv(a, b):
    return (a + b - 1) // b


def _round_up(a, b):
    return _cdiv(a, b) * b


def _mse_loss_kernel(x_ref, w_ref, b_ref, y_ref, out_ref, acc_ref, *,
                     tb, n_valid_rows, n_inner, needs_row_mask):
    """Fused linear forward + squared-error accumulation.

    Grid = (n_par, n_inner).  The outer axis is "parallel" (splits batch tiles
    across TensorCores on v7x; a plain loop on v5e/v6e); the inner axis is the
    "arbitrary" reduction over batch tiles.  The hot loop is MXU matmul + VPU
    elementwise adds into a VMEM accumulator; the single cross-lane (XLU)
    reduction happens once, in the finalize branch.
    """
    p = pl.program_id(0)
    i = pl.program_id(1)

    @pl.when(i == 0)
    def _init():
        acc_ref[...] = jnp.zeros_like(acc_ref)

    # pred = x @ w + b   (bf16 operands, f32 accumulation on the MXU).
    pred = jnp.dot(x_ref[...], w_ref[...], preferred_element_type=jnp.float32)
    pred = pred + b_ref[...]                 # (tb, Dp) + (1, Dp): cheap VPU filler
    diff = pred - y_ref[...].astype(jnp.float32)
    sq = diff * diff

    if needs_row_mask:
        # Only emitted when B was padded up to the tile grid: zero out the
        # padded batch rows (their pred == bias, which would pollute the sum).
        tile_start = (p * n_inner + i) * tb
        row = jax.lax.broadcasted_iota(jnp.int32, sq.shape, 0) + tile_start
        sq = jnp.where(row < n_valid_rows, sq, 0.0)

    acc_ref[...] += sq                       # pure VPU, no per-step XLU/scalar work

    @pl.when(i == n_inner - 1)
    def _finalize():
        total = jnp.sum(acc_ref[...])        # one full reduce per parallel slot
        out_ref[...] = jnp.full(out_ref.shape, total, dtype=out_ref.dtype)


def mse_loss_pallas(x, w, b, y, *, tb=None, n_par=None,
                    compute_dtype=jnp.bfloat16):
    """Scalar MSE( x @ w + b, y ) computed by a fused Pallas TPU kernel."""
    B, Din = x.shape
    Din_w, Dout = w.shape
    assert Din_w == Din and y.shape == (B, Dout) and b.shape[-1] == Dout

    # Pad feature dims to the 128-lane axis (zero cols/rows contribute 0 to the
    # loss); pad batch up to the tile grid (masked in-kernel).
    d_in = _round_up(Din, 128)
    d_out = _round_up(Dout, 128)

    if tb is None:
        # Large tiles amortize the ~0.35us/step pipeline overhead and fill the
        # 128/256-row MXU; clamp for small batches.
        tb = min(512, _round_up(B, 8))
    tb = _round_up(tb, 8)

    n_tiles = _cdiv(B, tb)
    if n_par is None:
        n_par = 2 if n_tiles >= 2 else 1     # 2-way split for v7x megacore
    n_tiles = _round_up(n_tiles, n_par)
    n_inner = n_tiles // n_par
    b_pad = n_tiles * tb
    needs_row_mask = (b_pad != B)

    cdt = jnp.dtype(compute_dtype)
    xp = jnp.zeros((b_pad, d_in), cdt).at[:B, :Din].set(x.astype(cdt))
    yp = jnp.zeros((b_pad, d_out), cdt).at[:B, :Dout].set(y.astype(cdt))
    wp = jnp.zeros((d_in, d_out), cdt).at[:Din, :Dout].set(w.astype(cdt))
    bp = jnp.zeros((1, d_out), jnp.float32).at[:, :Dout].set(
        b.reshape(1, Dout).astype(jnp.float32))

    inv_n = 1.0 / float(B * Dout)

    kernel = functools.partial(
        _mse_loss_kernel, tb=tb, n_valid_rows=B, n_inner=n_inner,
        needs_row_mask=needs_row_mask)

    # VMEM budget: double-buffered weight + x/y tiles + bias, plus accumulator.
    # TODO(synk): K-tile the weight (extra 'arbitrary' grid axis over d_in) when
    # d_in*d_out*itemsize approaches the v7x 64 MiB VMEM budget.
    itemsize = cdt.itemsize
    est = (2 * (d_in * d_out * itemsize        # resident weight
                + tb * d_in * itemsize         # x tile (double-buffered)
                + tb * d_out * itemsize        # y tile (double-buffered)
                + d_out * 4)                   # bias row
           + tb * d_out * 4)                   # f32 accumulator scratch
    vmem_limit = int(min(max(2 * est, 32 * 2**20), 100 * 2**20))

    partials = pl.pallas_call(
        kernel,
        out_shape=jax.ShapeDtypeStruct((n_par, 8, 128), jnp.float32),
        grid_spec=pltpu.PrefetchScalarGridSpec(
            num_scalar_prefetch=0,
            grid=(n_par, n_inner),
            in_specs=[
                pl.BlockSpec((tb, d_in), lambda p, i: (p * n_inner + i, 0)),
                pl.BlockSpec((d_in, d_out), lambda p, i: (0, 0)),   # full weight
                pl.BlockSpec((1, d_out), lambda p, i: (0, 0)),      # bias row
                pl.BlockSpec((tb, d_out), lambda p, i: (p * n_inner + i, 0)),
            ],
            out_specs=pl.BlockSpec((1, 8, 128), lambda p, i: (p, 0, 0)),
            scratch_shapes=[pltpu.VMEM((tb, d_out), jnp.float32)],
        ),
        compiler_params=pltpu.CompilerParams(
            dimension_semantics=("parallel", "arbitrary"),
            vmem_limit_bytes=vmem_limit,
        ),
    )(xp, wp, bp, yp)

    # One partial sum per parallel slot (replicated across its 8x128 slab).
    return jnp.sum(partials[:, 0, 0]) * inv_n


class LinearModel:
    """Deterministic stand-in for `model` in LossBase.__init__."""

    def __init__(self, din, dout, key):
        kw, kb = jax.random.split(key)
        self.w = (jax.random.normal(kw, (din, dout), jnp.float32)
                  / jnp.sqrt(jnp.float32(din)))
        self.b = jax.random.normal(kb, (1, dout), jnp.float32) * 0.01


class LossBase:
    """JAX/Pallas port of lib/trainer.py::LossBase.

    forward(*batch) -> dict of metrics; any scalar (rank-0) metric is
    unsqueezed to shape (1,), matching the PyTorch behaviour.
    """

    def __init__(self, model, **kwargs):
        self.model = model
        self.opts = kwargs

    def forward(self, *batch, **kwargs):
        metrics = self.compute_loss(self.model, *batch, **dict(self.opts, **kwargs))
        out = {}
        for key, val in metrics.items():
            if isinstance(val, jnp.ndarray) and val.ndim == 0:
                val = jnp.expand_dims(val, 0)   # torch.unsqueeze(metric, 0)
            out[key] = val
        return out

    __call__ = forward

    @staticmethod
    def compute_loss(model, *batch, **kwargs):
        # Concrete instantiation (the PyTorch base class raises
        # NotImplementedError): linear-regression MSE, fused Pallas hot path.
        x, y = batch
        loss = mse_loss_pallas(x, model.w, model.b, y)
        return {"loss": loss}


def _bf16_round(a):
    return a.astype(jnp.bfloat16).astype(jnp.float32)


if __name__ == "__main__":
    key = jax.random.PRNGKey(0)
    k_model, k_x, k_y, k2 = jax.random.split(key, 4)

    # --- Test 1: module-level semantics (scalar -> (1,)) at small shapes. ---
    B, Din, Dout = 16, 32, 32
    model = LinearModel(Din, Dout, k_model)
    x = jax.random.normal(k_x, (B, Din), jnp.float32)
    y = jax.random.normal(k_y, (B, Dout), jnp.float32)

    loss_module = LossBase(model)
    metrics = loss_module(x, y)
    loss = jax.block_until_ready(metrics["loss"])
    assert metrics["loss"].shape == (1,), metrics["loss"].shape

    ref_bf16 = jnp.mean(
        (_bf16_round(x) @ _bf16_round(model.w) + model.b - _bf16_round(y)) ** 2)
    ref_f32 = jnp.mean((x @ model.w + model.b - y) ** 2)
    assert jnp.allclose(loss[0], ref_bf16, rtol=1e-2, atol=1e-2), (loss, ref_bf16)
    assert jnp.allclose(loss[0], ref_f32, rtol=5e-2, atol=5e-2), (loss, ref_f32)

    # --- Test 2: exercise batch-remainder masking, feature padding and the ---
    # --- 2-way parallel split of the reduction grid.                       ---
    kw2, kx2, ky2 = jax.random.split(k2, 3)
    B2, Din2, Dout2 = 72, 40, 20
    w2 = jax.random.normal(kw2, (Din2, Dout2), jnp.float32) / jnp.sqrt(
        jnp.float32(Din2))
    b2 = jnp.zeros((1, Dout2), jnp.float32) + 0.1
    x2 = jax.random.normal(kx2, (B2, Din2), jnp.float32)
    y2 = jax.random.normal(ky2, (B2, Dout2), jnp.float32)

    loss2 = jax.block_until_ready(mse_loss_pallas(x2, w2, b2, y2, tb=32))
    ref2 = jnp.mean((_bf16_round(x2) @ _bf16_round(w2) + b2 - _bf16_round(y2)) ** 2)
    assert jnp.allclose(loss2, ref2, rtol=1e-2, atol=1e-2), (loss2, ref2)

    print("KERNEL_OK")
</pallas_src>

<mosaic_0001>
module attributes {stable_mosaic.version = 11 : i64} {
  func.func @_mse_loss_kernel(%arg0: i32, %arg1: i32, %arg2: memref<16x128xbf16, #tpu.memory_space<vmem>>, %arg3: memref<128x128xbf16, #tpu.memory_space<vmem>>, %arg4: memref<1x128xf32, #tpu.memory_space<vmem>>, %arg5: memref<16x128xbf16, #tpu.memory_space<vmem>>, %arg6: memref<1x8x128xf32, #tpu.memory_space<vmem>>, %arg7: memref<16x128xf32, #tpu.memory_space<vmem>>) attributes {dimension_semantics = [#tpu.dimension_semantics<parallel>, #tpu.dimension_semantics<arbitrary>], iteration_bounds = array<i64: 1, 1>, scalar_prefetch = 0 : i64, scratch_operands = 1 : i64, tpu.core_type = #tpu.core_type<tc>, window_params = [{transform_indices = @transform_0, window_bounds = array<i64: 16, 128>}, {pipeline_mode = #tpu.pipeline_mode<synchronous>, transform_indices = @transform_1, window_bounds = array<i64: 128, 128>}, {pipeline_mode = #tpu.pipeline_mode<synchronous>, transform_indices = @transform_2, window_bounds = array<i64: 1, 128>}, {transform_indices = @transform_3, window_bounds = array<i64: 16, 128>}, {transform_indices = @transform_4, window_bounds = array<i64: 1, 8, 128>}]} {
    %c0_i32 = arith.constant 0 : i32
    %0 = arith.cmpi eq, %arg1, %c0_i32 : i32
    %1 = arith.extui %0 : i1 to i32
    %c0_i32_0 = arith.constant 0 : i32
    %2 = arith.cmpi ne, %1, %c0_i32_0 : i32
    scf.if %2 {
      %cst_14 = arith.constant 0.000000e+00 : f32
      %19 = vector.broadcast %cst_14 : f32 to vector<16x128xf32>
      %c0_15 = arith.constant 0 : index
      %c0_16 = arith.constant 0 : index
      %20 = vector.load %arg7[%c0_15, %c0_16] : memref<16x128xf32, #tpu.memory_space<vmem>>, vector<16x128xf32>
      tpu.vector_store %arg7[%c0_15, %c0_16], %19 {strides = array<i32>} : memref<16x128xf32, #tpu.memory_space<vmem>>, vector<16x128xf32>,
    } else {
    }
    %c0 = arith.constant 0 : index
    %c0_1 = arith.constant 0 : index
    %3 = vector.load %arg2[%c0, %c0_1] : memref<16x128xbf16, #tpu.memory_space<vmem>>, vector<16x128xbf16>
    %c0_2 = arith.constant 0 : index
    %c0_3 = arith.constant 0 : index
    %4 = vector.load %arg3[%c0_2, %c0_3] : memref<128x128xbf16, #tpu.memory_space<vmem>>, vector<128x128xbf16>
    %cst = arith.constant dense<0.000000e+00> : vector<16x128xf32>
    %5 = tpu.matmul %3, %4, %cst {dimension_numbers = #tpu.dot_dimension_numbers<[1], [0], [0], [1], [0, 0, 1, 1], [], []>} : vector<16x128xbf16>, vector<128x128xbf16>, vector<16x128xf32> -> vector<16x128xf32>
    %c0_4 = arith.constant 0 : index
    %c0_5 = arith.constant 0 : index
    %6 = vector.load %arg4[%c0_4, %c0_5] : memref<1x128xf32, #tpu.memory_space<vmem>>, vector<1x128xf32>
    %7 = vector.broadcast %6 : vector<1x128xf32> to vector<16x128xf32>
    %8 = arith.addf %5, %7 : vector<16x128xf32>
    %c0_6 = arith.constant 0 : index
    %c0_7 = arith.constant 0 : index
    %9 = vector.load %arg5[%c0_6, %c0_7] : memref<16x128xbf16, #tpu.memory_space<vmem>>, vector<16x128xbf16>
    %10 = arith.extf %9 : vector<16x128xbf16> to vector<16x128xf32>
    %11 = arith.subf %8, %10 : vector<16x128xf32>
    %12 = arith.mulf %11, %11 : vector<16x128xf32>
    %c0_8 = arith.constant 0 : index
    %c0_9 = arith.constant 0 : index
    %13 = vector.load %arg7[%c0_8, %c0_9] : memref<16x128xf32, #tpu.memory_space<vmem>>, vector<16x128xf32>
    %14 = arith.addf %13, %12 : vector<16x128xf32>
    %c0_10 = arith.constant 0 : index
    %c0_11 = arith.constant 0 : index
    %15 = vector.load %arg7[%c0_10, %c0_11] : memref<16x128xf32, #tpu.memory_space<vmem>>, vector<16x128xf32>
    tpu.vector_store %arg7[%c0_10, %c0_11], %14 {strides = array<i32>} : memref<16x128xf32, #tpu.memory_space<vmem>>, vector<16x128xf32>,
    %c0_i32_12 = arith.constant 0 : i32
    %16 = arith.cmpi eq, %arg1, %c0_i32_12 : i32
    %17 = arith.extui %16 : i1 to i32
    %c0_i32_13 = arith.constant 0 : i32
    %18 = arith.cmpi ne, %17, %c0_i32_13 : i32
    scf.if %18 {
      %c0_14 = arith.constant 0 : index
      %c0_15 = arith.constant 0 : index
      %19 = vector.load %arg7[%c0_14, %c0_15] : memref<16x128xf32, #tpu.memory_space<vmem>>, vector<16x128xf32>
      %20 = vector.shape_cast %19 : vector<16x128xf32> to vector<1x16x128xf32>
      %cst_16 = arith.constant dense<0.000000e+00> : vector<1xf32>
      %21 = vector.multi_reduction <add>, %20, %cst_16 [1, 2] : vector<1x16x128xf32> to vector<1xf32>
      %22 = vector.shape_cast %21 : vector<1xf32> to vector<1x1x1xf32>
      %23 = vector.extract %22[0, 0, 0] : f32 from vector<1x1x1xf32>
      %24 = vector.broadcast %23 : f32 to vector<1x8x128xf32>
      %c0_17 = arith.constant 0 : index
      %c0_18 = arith.constant 0 : index
      %c0_19 = arith.constant 0 : index
      %25 = vector.load %arg6[%c0_17, %c0_18, %c0_19] : memref<1x8x128xf32, #tpu.memory_space<vmem>>, vector<1x8x128xf32>
      tpu.vector_store %arg6[%c0_17, %c0_18, %c0_19], %24 {strides = array<i32>} : memref<1x8x128xf32, #tpu.memory_space<vmem>>, vector<1x8x128xf32>,
    } else {
    }
    return
  }
  func.func @transform_0(%arg0: i32, %arg1: i32) -> (i32, i32) {
    %c1_i32 = arith.constant 1 : i32
    %0 = arith.muli %arg0, %c1_i32 : i32
    %1 = arith.addi %0, %arg1 : i32
    %c0_i32 = arith.constant 0 : i32
    %c0_i32_0 = arith.constant 0 : i32
    return %1, %c0_i32 : i32, i32
  }
  func.func @transform_1(%arg0: i32, %arg1: i32) -> (i32, i32) {
    %c0_i32 = arith.constant 0 : i32
    %c0_i32_0 = arith.constant 0 : i32
    %c0_i32_1 = arith.constant 0 : i32
    return %c0_i32, %c0_i32_0 : i32, i32
  }
  func.func @transform_2(%arg0: i32, %arg1: i32) -> (i32, i32) {
    %c0_i32 = arith.constant 0 : i32
    %c0_i32_0 = arith.constant 0 : i32
    %c0_i32_1 = arith.constant 0 : i32
    return %c0_i32, %c0_i32_0 : i32, i32
  }
  func.func @transform_3(%arg0: i32, %arg1: i32) -> (i32, i32) {
    %c1_i32 = arith.constant 1 : i32
    %0 = arith.muli %arg0, %c1_i32 : i32
    %1 = arith.addi %0, %arg1 : i32
    %c0_i32 = arith.constant 0 : i32
    %c0_i32_0 = arith.constant 0 : i32
    return %1, %c0_i32 : i32, i32
  }
  func.func @transform_4(%arg0: i32, %arg1: i32) -> (i32, i32, i32) {
    %c0_i32 = arith.constant 0 : i32
    %c0_i32_0 = arith.constant 0 : i32
    %c0_i32_1 = arith.constant 0 : i32
    return %arg0, %c0_i32, %c0_i32_0 : i32, i32, i32
  }
}

</mosaic_0001>

<llo_original>
// kernel: tpu_custom_call.1
$region0: #{tpu_custom_call.1}
  #allocation0 [shape = 'u32[]', space=smem, size = 0x4, offset = 0x4, fixed_abs, tag = 'smem constant byte address 0x4 - core index']
  #allocation1 [shape = 'u32[144,128]{1,0:T(1,128)}', space=vmem, size = 0x12000, scoped, tag = 'internal scratch']
  #allocation2 [shape = 'f32[16,128]{1,0:T(8,128)}', space=vmem, size = 0x2000, scoped, tag = 'scratch operand']
  %s0 = inlined_call_operand.hbm [shape: bf16[16,128], index: 0, kind: input, shape index: {}]
  %s1 = inlined_call_operand.hbm [shape: bf16[128,128], index: 1, kind: input, shape index: {}]
  %s2 = inlined_call_operand.vmem [shape: f32[1,128], index: 2, kind: input, shape index: {}]
  %s3 = inlined_call_operand.vmem [shape: bf16[16,128], index: 3, kind: input, shape index: {}]
  %s4 = inlined_call_operand.hbm [shape: f32[1,8,128], index: 4, kind: output, shape index: {}]
  %s5 = sld [smem:[#allocation0]]
  $region42: #{tpu_custom_call.1} parent=0
    _
  %s7 = ssub.s32 1, %s5
  %s8 = scalar_select 0, %s7, %s5
  $region1: #{tpu_custom_call.1} parent=0
    #allocation3 [shape = 'u8[4096]{0}', space=vmem, size = 0x1000, scoped, tag = 'input window, operand 0, single buffered']
    #allocation4 [shape = 's32[1]{0}', space=sflag, size = 0x4, scoped, tag = 'scoped memory for tpu_custom_call.1']
    #allocation5 [shape = 's32[1]{0}', space=sflag, size = 0x4, scoped, tag = 'scoped memory for tpu_custom_call.1']
    #allocation6 [shape = 'u8[32768]{0}', space=vmem, size = 0x8000, scoped, tag = 'input window, operand 1, single buffered']
    #allocation7 [shape = 's32[1]{0}', space=sflag, size = 0x4, scoped, tag = 'scoped memory for tpu_custom_call.1']
    #allocation8 [shape = 'u8[4096]{0}', space=vmem, size = 0x1000, scoped, tag = 'output window, operand 0, single buffered']
    %9 = vsyncpa [#allocation4], 0
    %10 = vsyncpa [#allocation7], 0
    %11 = vsyncpa [#allocation5], 0
    // Predicated region
    $region2: #{tpu_custom_call.1} parent=1 // pred_check
      _
    $region3: #{tpu_custom_call.1} parent=1 // pred_check_branch
      %13 = sbr.rel (0) target = $region5
    $region4: #{tpu_custom_call.1} parent=1 // pred_region
      %s14 = sadd.s32 0, 0
      %s15 = smul.u32 2, %s14
      %s17 = ssub.s32 128, 128
      %18 = vsyncadd [#allocation4], %s17
      %s19 = smul.addr %s15, 64
      %s20 = scalar_lea.hbm %s0, %s19
      %s21 = sshll.u32 [#allocation3], 4
      %s22 = int_to_ptr.vmem [resolvable:$true] %s21
      %27 = dma.hbm_to_vmem [thread:$0]  %s20, 128, %s22, [#allocation4], 64, 64, 4
    $region5: #{tpu_custom_call.1} parent=1 // pred_fallthru
      _
    // Predicated region
    $region6: #{tpu_custom_call.1} parent=1 // pred_check
      _
    $region7: #{tpu_custom_call.1} parent=1 // pred_check_branch
      %29 = sbr.rel (0) target = $region9
    $region8: #{tpu_custom_call.1} parent=1 // pred_region
      %s31 = ssub.s32 1024, 1024
      %32 = vsyncadd [#allocation7], %s31
      %s33 = sshll.u32 [#allocation6], 4
      %s34 = int_to_ptr.vmem [resolvable:$true] %s33
      %39 = dma.hbm_to_vmem [thread:$0]  %s1, 1024, %s34, [#allocation7], 64, 64, 4
    $region9: #{tpu_custom_call.1} parent=1 // pred_fallthru
      _
    // Predicated region
    $region10: #{tpu_custom_call.1} parent=1 // pred_check
      _
    $region11: #{tpu_custom_call.1} parent=1 // pred_check_branch
      %41 = sbr.rel (0) target = $region13
    $region12: #{tpu_custom_call.1} parent=1 // pred_region
      _
    $region13: #{tpu_custom_call.1} parent=1 // pred_fallthru
      _
    // Predicated region
    $region14: #{tpu_custom_call.1} parent=1 // pred_check
      _
    $region15: #{tpu_custom_call.1} parent=1 // pred_check_branch
      %43 = sbr.rel (0) target = $region17
    $region16: #{tpu_custom_call.1} parent=1 // pred_region
      %s44 = sadd.s32 0, 0
      %s45 = smul.u32 2, %s44
      %p46 = scmp.lt.s32.totalorder %s45, 1
      %s47 = scalar_select %p46, %s45, 1
      %s48 = smul.addr %s47, 4
      %s49 = scalar_lea.vmem %s3, %s48
      %s50 = sadd.s32 0, 0
      %s51 = smul.u32 2, %s50
    $region17: #{tpu_custom_call.1} parent=1 // pred_fallthru
      _
    // Predicated region
    $region18: #{tpu_custom_call.1} parent=1 // pred_check
      _
    $region19: #{tpu_custom_call.1} parent=1 // pred_check_branch
      %53 = sbr.rel (0) target = $region21
    $region20: #{tpu_custom_call.1} parent=1 // pred_region
      %54 = dma.done [#allocation4], 128
    $region21: #{tpu_custom_call.1} parent=1 // pred_fallthru
      _
    // Predicated region
    $region22: #{tpu_custom_call.1} parent=1 // pred_check
      _
    $region23: #{tpu_custom_call.1} parent=1 // pred_check_branch
      %56 = sbr.rel (0) target = $region25
    $region24: #{tpu_custom_call.1} parent=1 // pred_region
      %57 = dma.done [#allocation7], 1024
    $region25: #{tpu_custom_call.1} parent=1 // pred_fallthru
      _
    %s58 = sadd.s32 0, 0
    %s59 = smul.u32 2, %s58
    %p60 = scmp.lt.s32.totalorder %s59, 1
    %s61 = scalar_select %p60, %s59, 1
    %s62 = smul.addr %s61, 4
    %s63 = scalar_lea.vmem %s3, %s62
    %s64 = sadd.s32 0, 0
    %s65 = smul.u32 2, %s64
    %s66 = sadd.s32 0, 0
    %s67 = smul.u32 2, %s66
    %p68 = scmp.lt.s32.totalorder %s67, 1
    %s69 = scalar_select %p68, %s67, 1
    %s70 = smul.addr %s69, 4
    %s71 = scalar_lea.vmem %s3, %s70
    %s72 = sadd.s32 0, 0
    %s73 = smul.u32 2, %s72
    %p75 = scmp.eq.s32.totalorder 0, 0
    // Predicated region
    $region26: #{tpu_custom_call.1} parent=1 // pred_check
      %p76 = pneg %p75
    $region27: #{tpu_custom_call.1} parent=1 // pred_check_branch
      %78 = sbr.rel (%p76) target = $region29
    $region28: #{tpu_custom_call.1} parent=1 // pred_region
      %79 = vst [vmem:[#allocation2] sm:$0xff] 0.0
      %80 = vst [vmem:[#allocation2 + $0x8] sm:$0xff] 0.0
    $region29: #{tpu_custom_call.1} parent=1 // pred_fallthru
      _
    %v81 = vld [vmem:[#allocation3] sm:$0xf]
    %v82 = vld [vmem:[#allocation3 + $0x4] sm:$0xf]
    %v83 = vld [vmem:[#allocation6] sm:$0xf]
    %v84 = vld [vmem:[#allocation6 + $0x4] sm:$0xf]
    %v85 = vld [vmem:[#allocation6 + $0x8] sm:$0xf]
    %v86 = vld [vmem:[#allocation6 + $0xc] sm:$0xf]
    %v87 = vld [vmem:[#allocation6 + $0x10] sm:$0xf]
    %v88 = vld [vmem:[#allocation6 + $0x14] sm:$0xf]
    %v89 = vld [vmem:[#allocation6 + $0x18] sm:$0xf]
    %v90 = vld [vmem:[#allocation6 + $0x1c] sm:$0xf]
    %v91 = vld [vmem:[#allocation6 + $0x20] sm:$0xf]
    %v92 = vld [vmem:[#allocation6 + $0x24] sm:$0xf]
    %v93 = vld [vmem:[#allocation6 + $0x28] sm:$0xf]
    %v94 = vld [vmem:[#allocation6 + $0x2c] sm:$0xf]
    %v95 = vld [vmem:[#allocation6 + $0x30] sm:$0xf]
    %v96 = vld [vmem:[#allocation6 + $0x34] sm:$0xf]
    %v97 = vld [vmem:[#allocation6 + $0x38] sm:$0xf]
    %v98 = vld [vmem:[#allocation6 + $0x3c] sm:$0xf]
    %v99 = vld [vmem:[%s2] sm:$0x1]
    %v101 = vlaneseq
    %v102 = vshrl.u32 %v101, 7
    %v103 = vsub.s32 0, %v102
    %v104 = vrot.slane %v99, %v103
    %v108 = vunpack.c.l.b16 %v81
    %v109 = vunpack.c.l.b16 %v82
    %v110 = vpack.c.b16 %v109, %v108
    %v128 = vunpack.c.l.b16 %v83
    %v129 = vunpack.c.l.b16 %v84
    %v130 = vunpack.c.l.b16 %v85
    %v131 = vunpack.c.l.b16 %v86
    %v132 = vunpack.c.l.b16 %v87
    %v133 = vunpack.c.l.b16 %v88
    %v134 = vunpack.c.l.b16 %v89
    %v135 = vunpack.c.l.b16 %v90
    %v136 = vunpack.c.l.b16 %v91
    %v137 = vunpack.c.l.b16 %v92
    %v138 = vunpack.c.l.b16 %v93
    %v139 = vunpack.c.l.b16 %v94
    %v140 = vunpack.c.l.b16 %v95
    %v141 = vunpack.c.l.b16 %v96
    %v142 = vunpack.c.l.b16 %v97
    %v143 = vunpack.c.l.b16 %v98
    %v144 = vpack.c.b16 %v129, %v128
    %v145 = vpack.c.b16 %v131, %v130
    %v146 = vpack.c.b16 %v133, %v132
    %v147 = vpack.c.b16 %v135, %v134
    %v148 = vpack.c.b16 %v137, %v136
    %v149 = vpack.c.b16 %v139, %v138
    %v150 = vpack.c.b16 %v141, %v140
    %v151 = vpack.c.b16 %v143, %v142
    %160 = vmatprep.subr.bf16.mxu0 0
    %161 = vmatpush1.bf16.msra.mxu0 %v144
    %162 = vmatprep.subr.bf16.mxu0 0
    %163 = vmatpush1.bf16.msra.mxu0 %v145
    %164 = vmatprep.subr.bf16.mxu0 0
    %165 = vmatpush1.bf16.msra.mxu0 %v146
    %166 = vmatprep.subr.bf16.mxu0 0
    %167 = vmatpush1.bf16.msra.mxu0 %v147
    %168 = vmatprep.subr.bf16.mxu0 0
    %169 = vmatpush1.bf16.msra.mxu0 %v148
    %170 = vmatprep.subr.bf16.mxu0 0
    %171 = vmatpush1.bf16.msra.mxu0 %v149
    %172 = vmatprep.subr.bf16.mxu0 0
    %173 = vmatpush1.bf16.msra.mxu0 %v150
    %174 = vmatprep.subr.bf16.mxu0 0
    %175 = vmatpush1.bf16.msra.mxu0 %v151
    %176 = vmatprep.subr.bf16.mxu0 0
    %177 = vmatpush1.bf16.msra.mxu0 0
    %178 = vmatprep.subr.bf16.mxu0 0
    %179 = vmatpush1.bf16.msra.mxu0 0
    %180 = vmatprep.subr.bf16.mxu0 0
    %181 = vmatpush1.bf16.msra.mxu0 0
    %182 = vmatprep.subr.bf16.mxu0 0
    %183 = vmatpush1.bf16.msra.mxu0 0
    %184 = vmatprep.subr.bf16.mxu0 0
    %185 = vmatpush1.bf16.msra.mxu0 0
    %186 = vmatprep.subr.bf16.mxu0 0
    %187 = vmatpush1.bf16.msra.mxu0 0
    %188 = vmatprep.subr.bf16.mxu0 0
    %189 = vmatpush1.bf16.msra.mxu0 0
    %190 = vmatprep.subr.bf16.mxu0 0
    %191 = vmatpush1.bf16.msra.mxu0 0
    %192 = vmatprep.mubr.bf16.mxu0 0
    %193 = vmatmul.mubr.bf16.gmra.mrb[0].mxu0 %v110
    %v194 = vpop.f32.mrb[0].mxu0
    %v195 = vadd.f32 %v104, %v194
    %v196 = vpop.f32.mrb[0].mxu0
    %v197 = vpop.f32.mrb[0].mxu0
    %v198 = vadd.f32 %v104, %v197
    %v199 = vpop.f32.mrb[0].mxu0
    %200 = vdwg.mxu0
    %v201 = vld [vmem:[%s71] sm:$0xf]
    %v202 = vld [vmem:[%s71 + $0x4] sm:$0xf]
    %v203 = vunpack.c.l.bf16 %v201
    %v204 = vunpack.c.l.bf16 %v202
    %v205 = vsub.f32 %v195, %v203
    %v206 = vsub.f32 %v198, %v204
    %v207 = vmul.f32 %v205, %v205
    %v208 = vmul.f32 %v206, %v206
    %v209 = vld [vmem:[#allocation2] sm:$0xff]
    %v210 = vld [vmem:[#allocation2 + $0x8] sm:$0xff]
    %v211 = vadd.f32 %v209, %v207
    %v212 = vadd.f32 %v210, %v208
    %213 = vst [vmem:[#allocation2] sm:$0xff] %v211
    %214 = vst [vmem:[#allocation2 + $0x8] sm:$0xff] %v212
    // Predicated region
    $region30: #{tpu_custom_call.1} parent=1 // pred_check
      %p215 = pneg %p75
    $region31: #{tpu_custom_call.1} parent=1 // pred_check_branch
      %217 = sbr.rel (%p215) target = $region33
    $region32: #{tpu_custom_call.1} parent=1 // pred_region
      %v218 = vld [vmem:[#allocation2] sm:$0xff]
      %v219 = vld [vmem:[#allocation2 + $0x8] sm:$0xff]
      %v220 = vadd.f32 %v218, %v219
      %221 = vadd.xlane.f32.xlu0 %v220
      %v222 = vpop.xlane.xlu0 %221
      %v223 = vrot.slane %v222, 4
      %v224 = vadd.f32 %v222, %v223
      %v225 = vrot.slane %v224, 2
      %v226 = vadd.f32 %v224, %v225
      %v227 = vrot.slane %v226, 1
      %v228 = vadd.f32 %v226, %v227
      %s229 = vtos %v228
      %v230 = vstv %s229
      %231 = vst [vmem:[#allocation8] sm:$0xff] %v230
    $region33: #{tpu_custom_call.1} parent=1 // pred_fallthru
      _
    // Predicated region
    $region34: #{tpu_custom_call.1} parent=1 // pred_check
      _
    $region35: #{tpu_custom_call.1} parent=1 // pred_check_branch
      %233 = sbr.rel (0) target = $region37
    $region36: #{tpu_custom_call.1} parent=1 // pred_region
      %s235 = ssub.s32 128, 128
      %236 = vsyncadd [#allocation5], %s235
      %s238 = sshll.u32 [#allocation8], 4
      %s239 = int_to_ptr.vmem [resolvable:$true] %s238
      %241 = dma.vmem_to_hbm [thread:$0]  %s239, 128, %s4, [#allocation5]
    $region37: #{tpu_custom_call.1} parent=1 // pred_fallthru
      _
    // Predicated region
    $region38: #{tpu_custom_call.1} parent=1 // pred_check
      _
    $region39: #{tpu_custom_call.1} parent=1 // pred_check_branch
      %243 = sbr.rel (0) target = $region41
    $region40: #{tpu_custom_call.1} parent=1 // pred_region
      %244 = dma.done [#allocation5], 128
    $region41: #{tpu_custom_call.1} parent=1 // pred_fallthru
      _
    %245 = vsyncpa [#allocation4], 1
    %246 = vsyncpa [#allocation7], 1
    %247 = vsyncpa [#allocation5], 1

</llo_original>
